<compile_context>
chip_gen: v7x
topology: tpu7x:2x2x1
jax: 0.10.0
libtpu: 0.0.40
codegen_flags: <defaults>
</compile_context>

<pallas_src>
import functools

import jax
import jax.numpy as jnp
import numpy as np
from jax.experimental import pallas as pl
from jax.experimental.pallas import tpu as pltpu


def _reduce_chunks(a, m, op):
    """Reduce the last axis of `a` (width k*m) over its k chunks of width m.

    Uses a log-depth binary fold when k is a power of two (4 VPU ops for the
    k=16 pose chunks) and a linear accumulation otherwise.
    """
    k = a.shape[-1] // m
    if k > 1 and (k & (k - 1)) == 0:
        while a.shape[-1] > m:
            h = a.shape[-1] // 2
            a = op(a[..., :h], a[..., h:])
        return a
    out = a[..., :m]
    for i in range(1, k):
        out = op(out, a[..., i * m:(i + 1) * m])
    return out


def _capsule_fc_kernel(x_ref, wr_ref, vn_ref, blk_ref, g_ref, b_ref,
                       out_ref, agr_ref, *, sd, M, scale, second_iter):
    """One grid step == one block of Bt batch elements.

    Layout:
        rows  (b, n)                      -> sublanes
        cols  c = a*(sd*M) + d*M + m      -> lanes   (width sd*sd*M = 256)
    """
    f32 = jnp.float32
    Bt, N, D = x_ref.shape          # D = sd*sd (pose elements per capsule)
    DM = D * M

    # --- pose votes: V[(b,n), (a,d,m)] = sum_x X[b,n,a,x] w[n,x,d,m] --------
    # Single MXU matmul: block-diagonal LHS (Bt*N, N*D) @ expanded RHS (N*D, D*M).
    X = x_ref[...].astype(f32)                                  # (Bt, N, D)
    L = (jnp.tile(X, (1, 1, N)) * blk_ref[...]).reshape(Bt * N, N * D)
    V4 = jnp.dot(L, wr_ref[...], preferred_element_type=f32)    # (Bt*N, D*M)
    V4 = V4.reshape(Bt, N, DM)

    # --- softmax over the joint (a, d) pose axis, per (b, n, m) --------------
    # Per-group max (exact stabilization; avoids the global-max underflow issue).
    mx = _reduce_chunks(V4, M, jnp.maximum)                     # (Bt, N, M)
    E = jnp.exp(V4 - jnp.tile(mx, (1, 1, D)))                   # (Bt, N, D*M)
    den = _reduce_chunks(E, M, jnp.add)                         # (Bt, N, M)

    # --- agreement (query-key), denominator folded in ------------------------
    # vn broadcasts over n (and over b on the first routing iteration).
    P = E * vn_ref[...][:, None, :]                             # (Bt, N, D*M)
    qknum = _reduce_chunks(P, M, jnp.add)                       # (Bt, N, M)
    qk = qknum / den
    if second_iter:
        qk = qk * scale
    agr_ref[...] = qk.astype(agr_ref.dtype)

    # --- routing softmax over out-capsules m ---------------------------------
    ex = jnp.exp(qk - jnp.max(qk, axis=-1, keepdims=True))
    r = ex / jnp.sum(ex, axis=-1, keepdims=True)
    if second_iter:
        r = r / (jnp.sum(r, axis=-1, keepdims=True) + 1e-10)

    # --- weighted vote aggregation over input capsules n ---------------------
    # out = sum_n r * (E / den) == sum_n (r / den) * E
    c = r / den                                                 # (Bt, N, M)
    W = E * jnp.tile(c, (1, 1, D))                              # (Bt, N, D*M)
    out = jnp.sum(W, axis=1)                                    # (Bt, D*M)

    # TODO(synk): nn.Dropout(self.dropout_rate) omitted — eval-mode identity.

    # --- LayerNorm over the D = sd*sd pose elements, per (b, m) --------------
    mu = _reduce_chunks(out, M, jnp.add) * (1.0 / D)            # (Bt, M)
    cent = out - jnp.tile(mu, (1, D))
    var = _reduce_chunks(cent * cent, M, jnp.add) * (1.0 / D)   # (Bt, M)
    inv = jax.lax.rsqrt(var + 1e-5)
    normed = cent * jnp.tile(inv, (1, D))
    out_ref[...] = (normed * g_ref[...] + b_ref[...]).astype(out_ref.dtype)  # (Bt, 256) lane-dense


def capsule_fc_forward(x, params, num_iter=0, next_capsule_value=None,
                       batch_block=64):
    """x: (B, N, in_d) float32. Returns (next_capsule_value (B, M, out_d), agreement (B, N, M))."""
    del num_iter  # unused by the PyTorch module as well
    w = params["w"]              # (N, sd, sd, M)
    Vp = params["V"]             # (M, in_d), row-normalized
    gamma = params["ln_gamma"]   # (out_d,)
    beta = params["ln_beta"]     # (out_d,)

    N, sd, _, M = w.shape
    D = sd * sd
    B = x.shape[0]
    scale = 1.0 / (D ** 0.5)

    # Batch tile.  Keep B > Bt on v7x so both TensorCores get grid steps.
    Bt = min(batch_block, B)
    B_pad = ((B + Bt - 1) // Bt) * Bt

    x_f = x.astype(jnp.float32).reshape(B, N, D)
    if B_pad != B:
        x_f = jnp.pad(x_f, ((0, B_pad - B), (0, 0), (0, 0)))

    # Expanded weights: R[(n, a2, x), (a, d, m)] = w[n, x, d, m] * delta(a2, a).
    # One-time wrapper cost; 128 x 256 f32 stays resident in VMEM.
    eye = jnp.eye(sd, dtype=jnp.float32)
    Wr = jnp.einsum('nxdm,ca->ncxadm', w.astype(jnp.float32), eye)
    Wr = Wr.reshape(N * D, D * M)

    # Block-diagonal mask for the in-kernel LHS build: keep only n' == n chunk.
    col = np.arange(N * D)
    blkL = jnp.asarray((col[None, :] // D == np.arange(N)[:, None]).astype(np.float32))  # (N, N*D)

    # LayerNorm affine, laid out on the (a, d, m) lane axis.
    gamma_row = jnp.broadcast_to(gamma.reshape(sd, sd, 1).astype(jnp.float32),
                                 (sd, sd, M)).reshape(1, D * M)
    beta_row = jnp.broadcast_to(beta.reshape(sd, sd, 1).astype(jnp.float32),
                                (sd, sd, M)).reshape(1, D * M)

    if next_capsule_value is None:
        second_iter = False
        # V16[m, a, d] -> vn[0, a*(sd*M) + d*M + m]  (single shared row)
        vn = (Vp.astype(jnp.float32).reshape(M, sd, sd)
              .transpose(1, 2, 0).reshape(1, D * M))
        vn_spec = pl.BlockSpec((1, D * M), lambda i: (0, 0))
    else:
        second_iter = True
        ncv = next_capsule_value.astype(jnp.float32)
        if B_pad != B:
            ncv = jnp.pad(ncv, ((0, B_pad - B), (0, 0), (0, 0)))
        vn = (ncv.reshape(B_pad, M, sd, sd)
              .transpose(0, 2, 3, 1).reshape(B_pad, D * M))
        vn_spec = pl.BlockSpec((Bt, D * M), lambda i: (i, 0))

    kernel = functools.partial(_capsule_fc_kernel, sd=sd, M=M, scale=scale,
                               second_iter=second_iter)

    pose, agr = pl.pallas_call(
        kernel,
        out_shape=(jax.ShapeDtypeStruct((B_pad, D * M), jnp.float32),   # lane-dense pose slab
                   jax.ShapeDtypeStruct((B_pad, N, M), jnp.float32)),   # agreement
        grid_spec=pltpu.PrefetchScalarGridSpec(
            num_scalar_prefetch=0,
            grid=(B_pad // Bt,),
            in_specs=[
                pl.BlockSpec((Bt, N, D), lambda i: (i, 0, 0)),   # x block
                pl.BlockSpec((N * D, D * M), lambda i: (0, 0)),  # expanded weights (resident)
                vn_spec,                                          # V / next_capsule_value
                pl.BlockSpec((N, N * D), lambda i: (0, 0)),      # block-diag mask
                pl.BlockSpec((1, D * M), lambda i: (0, 0)),      # LayerNorm gamma
                pl.BlockSpec((1, D * M), lambda i: (0, 0)),      # LayerNorm beta
            ],
            out_specs=[
                pl.BlockSpec((Bt, D * M), lambda i: (i, 0)),
                pl.BlockSpec((Bt, N, M), lambda i: (i, 0, 0)),
            ],
        ),
        compiler_params=pltpu.CompilerParams(
            dimension_semantics=("parallel",)),
    )(x_f, Wr, vn, blkL, gamma_row, beta_row)

    next_cap = (pose[:B].reshape(B, sd, sd, M)
                .transpose(0, 3, 1, 2).reshape(B, M, D))
    return next_cap, agr[:B]


def init_params(key, in_n_capsules, in_d_capsules, out_n_capsules, out_d_capsules):
    """Deterministic synthetic parameters matching CapsuleFC.__init__ (matrix_pose=True)."""
    sd = int(np.sqrt(in_d_capsules))
    k_w, k_v = jax.random.split(key)
    weight_init_const = np.sqrt(out_n_capsules / (sd * in_n_capsules))
    w = weight_init_const * jax.random.normal(
        k_w, (in_n_capsules, sd, sd, out_n_capsules), jnp.float32)
    init_w2v_att_fa = jax.random.normal(k_v, (out_n_capsules, in_d_capsules), jnp.float32)
    norms = jnp.sqrt(jnp.sum(init_w2v_att_fa ** 2, axis=1, keepdims=True))
    V = init_w2v_att_fa / jnp.maximum(norms, 1e-12)     # F.normalize(dim=1)
    gamma = jnp.ones((out_d_capsules,), jnp.float32)    # LayerNorm weight
    beta = jnp.zeros((out_d_capsules,), jnp.float32)    # LayerNorm bias
    return dict(w=w, V=V, ln_gamma=gamma, ln_beta=beta)


def reference_forward(x, params, next_capsule_value=None):
    """Pure-JAX mirror of the PyTorch forward (matrix_pose=True, eval mode)."""
    w, Vp = params["w"], params["V"]
    gamma, beta = params["ln_gamma"], params["ln_beta"]
    N, sd, _, M = w.shape
    D = sd * sd
    B = x.shape[0]
    scale = 1.0 / (D ** 0.5)

    xr = x.reshape(B, N, sd, sd)
    V16 = Vp.reshape(M, sd, sd)
    V = jnp.einsum("nxdm,bnax->bnadm", w, xr)
    Vsm = jax.nn.softmax(V.reshape(B, N, D, M), axis=2).reshape(B, N, sd, sd, M)
    if next_capsule_value is None:
        qk = jnp.einsum("bnadm,mad->bnm", Vsm, V16)
        agreement = qk
        r = jax.nn.softmax(qk, axis=2)
    else:
        ncv = next_capsule_value.reshape(B, M, sd, sd)
        qk = jnp.einsum("bnadm,bmad->bnm", Vsm, ncv) * scale
        agreement = qk
        r = jax.nn.softmax(qk, axis=2)
        r = r / (jnp.sum(r, axis=2, keepdims=True) + 1e-10)
    out = jnp.einsum("bnm,bnadm->bmad", r, Vsm).reshape(B, M, D)
    mu = out.mean(-1, keepdims=True)
    var = ((out - mu) ** 2).mean(-1, keepdims=True)
    out = (out - mu) / jnp.sqrt(var + 1e-5) * gamma + beta
    return out, agreement


if __name__ == "__main__":
    # Small, module-consistent shapes: in_d_capsules = out_d_capsules = 16 (sqrt_d = 4)
    B, N, in_d, M, out_d = 2, 8, 16, 16, 16

    key = jax.random.PRNGKey(0)
    k_params, k_x = jax.random.split(key)
    params = init_params(k_params, N, in_d, M, out_d)
    x = jax.random.normal(k_x, (B, N, in_d), jnp.float32)

    # First routing iteration (next_capsule_value=None branch)
    out1, agr1 = capsule_fc_forward(x, params, num_iter=0, next_capsule_value=None)
    jax.block_until_ready((out1, agr1))
    ref_o1, ref_a1 = reference_forward(x, params, next_capsule_value=None)
    np.testing.assert_allclose(np.asarray(out1), np.asarray(ref_o1), atol=1e-4, rtol=1e-4)
    np.testing.assert_allclose(np.asarray(agr1), np.asarray(ref_a1), atol=1e-4, rtol=1e-4)

    # Second routing iteration (next_capsule_value provided branch)
    out2, agr2 = capsule_fc_forward(x, params, num_iter=1, next_capsule_value=out1)
    jax.block_until_ready((out2, agr2))
    ref_o2, ref_a2 = reference_forward(x, params, next_capsule_value=out1)
    np.testing.assert_allclose(np.asarray(out2), np.asarray(ref_o2), atol=1e-4, rtol=1e-4)
    np.testing.assert_allclose(np.asarray(agr2), np.asarray(ref_a2), atol=1e-4, rtol=1e-4)

    print("KERNEL_OK")
</pallas_src>

<mosaic_0001>
module attributes {stable_mosaic.version = 11 : i64} {
  func.func @_capsule_fc_kernel(%arg0: i32, %arg1: memref<2x8x16xf32, #tpu.memory_space<vmem>>, %arg2: memref<128x256xf32, #tpu.memory_space<vmem>>, %arg3: memref<1x256xf32, #tpu.memory_space<vmem>>, %arg4: memref<8x128xf32, #tpu.memory_space<vmem>>, %arg5: memref<1x256xf32, #tpu.memory_space<vmem>>, %arg6: memref<1x256xf32, #tpu.memory_space<vmem>>, %arg7: memref<2x256xf32, #tpu.memory_space<vmem>>, %arg8: memref<2x8x16xf32, #tpu.memory_space<vmem>>) attributes {dimension_semantics = [#tpu.dimension_semantics<parallel>], iteration_bounds = array<i64: 1>, scalar_prefetch = 0 : i64, scratch_operands = 0 : i64, tpu.core_type = #tpu.core_type<tc>, window_params = [{transform_indices = @transform_0, window_bounds = array<i64: 2, 8, 16>}, {pipeline_mode = #tpu.pipeline_mode<synchronous>, transform_indices = @transform_1, window_bounds = array<i64: 128, 256>}, {pipeline_mode = #tpu.pipeline_mode<synchronous>, transform_indices = @transform_2, window_bounds = array<i64: 1, 256>}, {pipeline_mode = #tpu.pipeline_mode<synchronous>, transform_indices = @transform_3, window_bounds = array<i64: 8, 128>}, {pipeline_mode = #tpu.pipeline_mode<synchronous>, transform_indices = @transform_4, window_bounds = array<i64: 1, 256>}, {pipeline_mode = #tpu.pipeline_mode<synchronous>, transform_indices = @transform_5, window_bounds = array<i64: 1, 256>}, {transform_indices = @transform_6, window_bounds = array<i64: 2, 256>}, {transform_indices = @transform_7, window_bounds = array<i64: 2, 8, 16>}]} {
    %c0 = arith.constant 0 : index
    %c0_0 = arith.constant 0 : index
    %c0_1 = arith.constant 0 : index
    %0 = vector.load %arg1[%c0, %c0_0, %c0_1] : memref<2x8x16xf32, #tpu.memory_space<vmem>>, vector<2x8x16xf32>
    %1 = tpu.concatenate %0, %0, %0, %0, %0, %0, %0, %0 in 2 : vector<2x8x16xf32>, vector<2x8x16xf32>, vector<2x8x16xf32>, vector<2x8x16xf32>, vector<2x8x16xf32>, vector<2x8x16xf32>, vector<2x8x16xf32>, vector<2x8x16xf32> -> vector<2x8x128xf32>
    %c0_2 = arith.constant 0 : index
    %c0_3 = arith.constant 0 : index
    %2 = vector.load %arg4[%c0_2, %c0_3] : memref<8x128xf32, #tpu.memory_space<vmem>>, vector<8x128xf32>
    %3 = vector.shape_cast %2 : vector<8x128xf32> to vector<1x8x128xf32>
    %4 = vector.broadcast %3 : vector<1x8x128xf32> to vector<2x8x128xf32>
    %5 = arith.mulf %1, %4 : vector<2x8x128xf32>
    %6 = vector.shape_cast %5 : vector<2x8x128xf32> to vector<16x128xf32>
    %c0_4 = arith.constant 0 : index
    %c0_5 = arith.constant 0 : index
    %7 = vector.load %arg2[%c0_4, %c0_5] : memref<128x256xf32, #tpu.memory_space<vmem>>, vector<128x256xf32>
    %cst = arith.constant dense<0.000000e+00> : vector<16x256xf32>
    %8 = tpu.matmul %6, %7, %cst {dimension_numbers = #tpu.dot_dimension_numbers<[1], [0], [0], [1], [0, 0, 1, 1], [], []>} : vector<16x128xf32>, vector<128x256xf32>, vector<16x256xf32> -> vector<16x256xf32>
    %9 = vector.shape_cast %8 : vector<16x256xf32> to vector<2x8x256xf32>
    %10 = vector.extract_strided_slice %9 {offsets = [0, 0, 0], sizes = [2, 8, 128], strides = [1, 1, 1]} : vector<2x8x256xf32> to vector<2x8x128xf32>
    %11 = vector.extract_strided_slice %9 {offsets = [0, 0, 128], sizes = [2, 8, 128], strides = [1, 1, 1]} : vector<2x8x256xf32> to vector<2x8x128xf32>
    %12 = arith.maximumf %10, %11 : vector<2x8x128xf32>
    %13 = vector.extract_strided_slice %12 {offsets = [0, 0, 0], sizes = [2, 8, 64], strides = [1, 1, 1]} : vector<2x8x128xf32> to vector<2x8x64xf32>
    %14 = vector.extract_strided_slice %12 {offsets = [0, 0, 64], sizes = [2, 8, 64], strides = [1, 1, 1]} : vector<2x8x128xf32> to vector<2x8x64xf32>
    %15 = arith.maximumf %13, %14 : vector<2x8x64xf32>
    %16 = vector.extract_strided_slice %15 {offsets = [0, 0, 0], sizes = [2, 8, 32], strides = [1, 1, 1]} : vector<2x8x64xf32> to vector<2x8x32xf32>
    %17 = vector.extract_strided_slice %15 {offsets = [0, 0, 32], sizes = [2, 8, 32], strides = [1, 1, 1]} : vector<2x8x64xf32> to vector<2x8x32xf32>
    %18 = arith.maximumf %16, %17 : vector<2x8x32xf32>
    %19 = vector.extract_strided_slice %18 {offsets = [0, 0, 0], sizes = [2, 8, 16], strides = [1, 1, 1]} : vector<2x8x32xf32> to vector<2x8x16xf32>
    %20 = vector.extract_strided_slice %18 {offsets = [0, 0, 16], sizes = [2, 8, 16], strides = [1, 1, 1]} : vector<2x8x32xf32> to vector<2x8x16xf32>
    %21 = arith.maximumf %19, %20 : vector<2x8x16xf32>
    %22 = tpu.concatenate %21, %21, %21, %21, %21, %21, %21, %21, %21, %21, %21, %21, %21, %21, %21, %21 in 2 : vector<2x8x16xf32>, vector<2x8x16xf32>, vector<2x8x16xf32>, vector<2x8x16xf32>, vector<2x8x16xf32>, vector<2x8x16xf32>, vector<2x8x16xf32>, vector<2x8x16xf32>, vector<2x8x16xf32>, vector<2x8x16xf32>, vector<2x8x16xf32>, vector<2x8x16xf32>, vector<2x8x16xf32>, vector<2x8x16xf32>, vector<2x8x16xf32>, vector<2x8x16xf32> -> vector<2x8x256xf32>
    %23 = arith.subf %9, %22 : vector<2x8x256xf32>
    %24 = math.exp %23 : vector<2x8x256xf32>
    %25 = vector.extract_strided_slice %24 {offsets = [0, 0, 0], sizes = [2, 8, 128], strides = [1, 1, 1]} : vector<2x8x256xf32> to vector<2x8x128xf32>
    %26 = vector.extract_strided_slice %24 {offsets = [0, 0, 128], sizes = [2, 8, 128], strides = [1, 1, 1]} : vector<2x8x256xf32> to vector<2x8x128xf32>
    %27 = arith.addf %25, %26 : vector<2x8x128xf32>
    %28 = vector.extract_strided_slice %27 {offsets = [0, 0, 0], sizes = [2, 8, 64], strides = [1, 1, 1]} : vector<2x8x128xf32> to vector<2x8x64xf32>
    %29 = vector.extract_strided_slice %27 {offsets = [0, 0, 64], sizes = [2, 8, 64], strides = [1, 1, 1]} : vector<2x8x128xf32> to vector<2x8x64xf32>
    %30 = arith.addf %28, %29 : vector<2x8x64xf32>
    %31 = vector.extract_strided_slice %30 {offsets = [0, 0, 0], sizes = [2, 8, 32], strides = [1, 1, 1]} : vector<2x8x64xf32> to vector<2x8x32xf32>
    %32 = vector.extract_strided_slice %30 {offsets = [0, 0, 32], sizes = [2, 8, 32], strides = [1, 1, 1]} : vector<2x8x64xf32> to vector<2x8x32xf32>
    %33 = arith.addf %31, %32 : vector<2x8x32xf32>
    %34 = vector.extract_strided_slice %33 {offsets = [0, 0, 0], sizes = [2, 8, 16], strides = [1, 1, 1]} : vector<2x8x32xf32> to vector<2x8x16xf32>
    %35 = vector.extract_strided_slice %33 {offsets = [0, 0, 16], sizes = [2, 8, 16], strides = [1, 1, 1]} : vector<2x8x32xf32> to vector<2x8x16xf32>
    %36 = arith.addf %34, %35 : vector<2x8x16xf32>
    %c0_6 = arith.constant 0 : index
    %c0_7 = arith.constant 0 : index
    %37 = vector.load %arg3[%c0_6, %c0_7] : memref<1x256xf32, #tpu.memory_space<vmem>>, vector<1x256xf32>
    %38 = vector.shape_cast %37 : vector<1x256xf32> to vector<1x1x256xf32>
    %39 = vector.broadcast %38 : vector<1x1x256xf32> to vector<2x8x256xf32>
    %40 = arith.mulf %24, %39 : vector<2x8x256xf32>
    %41 = vector.extract_strided_slice %40 {offsets = [0, 0, 0], sizes = [2, 8, 128], strides = [1, 1, 1]} : vector<2x8x256xf32> to vector<2x8x128xf32>
    %42 = vector.extract_strided_slice %40 {offsets = [0, 0, 128], sizes = [2, 8, 128], strides = [1, 1, 1]} : vector<2x8x256xf32> to vector<2x8x128xf32>
    %43 = arith.addf %41, %42 : vector<2x8x128xf32>
    %44 = vector.extract_strided_slice %43 {offsets = [0, 0, 0], sizes = [2, 8, 64], strides = [1, 1, 1]} : vector<2x8x128xf32> to vector<2x8x64xf32>
    %45 = vector.extract_strided_slice %43 {offsets = [0, 0, 64], sizes = [2, 8, 64], strides = [1, 1, 1]} : vector<2x8x128xf32> to vector<2x8x64xf32>
    %46 = arith.addf %44, %45 : vector<2x8x64xf32>
    %47 = vector.extract_strided_slice %46 {offsets = [0, 0, 0], sizes = [2, 8, 32], strides = [1, 1, 1]} : vector<2x8x64xf32> to vector<2x8x32xf32>
    %48 = vector.extract_strided_slice %46 {offsets = [0, 0, 32], sizes = [2, 8, 32], strides = [1, 1, 1]} : vector<2x8x64xf32> to vector<2x8x32xf32>
    %49 = arith.addf %47, %48 : vector<2x8x32xf32>
    %50 = vector.extract_strided_slice %49 {offsets = [0, 0, 0], sizes = [2, 8, 16], strides = [1, 1, 1]} : vector<2x8x32xf32> to vector<2x8x16xf32>
    %51 = vector.extract_strided_slice %49 {offsets = [0, 0, 16], sizes = [2, 8, 16], strides = [1, 1, 1]} : vector<2x8x32xf32> to vector<2x8x16xf32>
    %52 = arith.addf %50, %51 : vector<2x8x16xf32>
    %53 = arith.divf %52, %36 : vector<2x8x16xf32>
    %c0_8 = arith.constant 0 : index
    %c0_9 = arith.constant 0 : index
    %c0_10 = arith.constant 0 : index
    %54 = vector.load %arg8[%c0_8, %c0_9, %c0_10] : memref<2x8x16xf32, #tpu.memory_space<vmem>>, vector<2x8x16xf32>
    tpu.vector_store %arg8[%c0_8, %c0_9, %c0_10], %53 {strides = array<i32>} : memref<2x8x16xf32, #tpu.memory_space<vmem>>, vector<2x8x16xf32>,
    %cst_11 = arith.constant dense<0xFF800000> : vector<2x8xf32>
    %55 = vector.multi_reduction <maximumf>, %53, %cst_11 [2] : vector<2x8x16xf32> to vector<2x8xf32>
    %56 = vector.shape_cast %55 : vector<2x8xf32> to vector<2x8x1xf32>
    %57 = vector.broadcast %56 : vector<2x8x1xf32> to vector<2x8x16xf32>
    %58 = arith.subf %53, %57 : vector<2x8x16xf32>
    %59 = math.exp %58 : vector<2x8x16xf32>
    %cst_12 = arith.constant dense<0.000000e+00> : vector<2x8xf32>
    %60 = vector.multi_reduction <add>, %59, %cst_12 [2] : vector<2x8x16xf32> to vector<2x8xf32>
    %61 = vector.shape_cast %60 : vector<2x8xf32> to vector<2x8x1xf32>
    %62 = vector.broadcast %61 : vector<2x8x1xf32> to vector<2x8x16xf32>
    %63 = arith.divf %59, %62 : vector<2x8x16xf32>
    %64 = arith.divf %63, %36 : vector<2x8x16xf32>
    %65 = tpu.concatenate %64, %64, %64, %64, %64, %64, %64, %64, %64, %64, %64, %64, %64, %64, %64, %64 in 2 : vector<2x8x16xf32>, vector<2x8x16xf32>, vector<2x8x16xf32>, vector<2x8x16xf32>, vector<2x8x16xf32>, vector<2x8x16xf32>, vector<2x8x16xf32>, vector<2x8x16xf32>, vector<2x8x16xf32>, vector<2x8x16xf32>, vector<2x8x16xf32>, vector<2x8x16xf32>, vector<2x8x16xf32>, vector<2x8x16xf32>, vector<2x8x16xf32>, vector<2x8x16xf32> -> vector<2x8x256xf32>
    %66 = arith.mulf %24, %65 : vector<2x8x256xf32>
    %cst_13 = arith.constant dense<0.000000e+00> : vector<2x256xf32>
    %67 = vector.multi_reduction <add>, %66, %cst_13 [1] : vector<2x8x256xf32> to vector<2x256xf32>
    %68 = vector.extract_strided_slice %67 {offsets = [0, 0], sizes = [2, 128], strides = [1, 1]} : vector<2x256xf32> to vector<2x128xf32>
    %69 = vector.extract_strided_slice %67 {offsets = [0, 128], sizes = [2, 128], strides = [1, 1]} : vector<2x256xf32> to vector<2x128xf32>
    %70 = arith.addf %68, %69 : vector<2x128xf32>
    %71 = vector.extract_strided_slice %70 {offsets = [0, 0], sizes = [2, 64], strides = [1, 1]} : vector<2x128xf32> to vector<2x64xf32>
    %72 = vector.extract_strided_slice %70 {offsets = [0, 64], sizes = [2, 64], strides = [1, 1]} : vector<2x128xf32> to vector<2x64xf32>
    %73 = arith.addf %71, %72 : vector<2x64xf32>
    %74 = vector.extract_strided_slice %73 {offsets = [0, 0], sizes = [2, 32], strides = [1, 1]} : vector<2x64xf32> to vector<2x32xf32>
    %75 = vector.extract_strided_slice %73 {offsets = [0, 32], sizes = [2, 32], strides = [1, 1]} : vector<2x64xf32> to vector<2x32xf32>
    %76 = arith.addf %74, %75 : vector<2x32xf32>
    %77 = vector.extract_strided_slice %76 {offsets = [0, 0], sizes = [2, 16], strides = [1, 1]} : vector<2x32xf32> to vector<2x16xf32>
    %78 = vector.extract_strided_slice %76 {offsets = [0, 16], sizes = [2, 16], strides = [1, 1]} : vector<2x32xf32> to vector<2x16xf32>
    %79 = arith.addf %77, %78 : vector<2x16xf32>
    %cst_14 = arith.constant 6.250000e-02 : f32
    %80 = vector.broadcast %cst_14 : f32 to vector<2x16xf32>
    %81 = arith.mulf %79, %80 : vector<2x16xf32>
    %82 = tpu.concatenate %81, %81, %81, %81, %81, %81, %81, %81, %81, %81, %81, %81, %81, %81, %81, %81 in 1 : vector<2x16xf32>, vector<2x16xf32>, vector<2x16xf32>, vector<2x16xf32>, vector<2x16xf32>, vector<2x16xf32>, vector<2x16xf32>, vector<2x16xf32>, vector<2x16xf32>, vector<2x16xf32>, vector<2x16xf32>, vector<2x16xf32>, vector<2x16xf32>, vector<2x16xf32>, vector<2x16xf32>, vector<2x16xf32> -> vector<2x256xf32>
    %83 = arith.subf %67, %82 : vector<2x256xf32>
    %84 = arith.mulf %83, %83 : vector<2x256xf32>
    %85 = vector.extract_strided_slice %84 {offsets = [0, 0], sizes = [2, 128], strides = [1, 1]} : vector<2x256xf32> to vector<2x128xf32>
    %86 = vector.extract_strided_slice %84 {offsets = [0, 128], sizes = [2, 128], strides = [1, 1]} : vector<2x256xf32> to vector<2x128xf32>
    %87 = arith.addf %85, %86 : vector<2x128xf32>
    %88 = vector.extract_strided_slice %87 {offsets = [0, 0], sizes = [2, 64], strides = [1, 1]} : vector<2x128xf32> to vector<2x64xf32>
    %89 = vector.extract_strided_slice %87 {offsets = [0, 64], sizes = [2, 64], strides = [1, 1]} : vector<2x128xf32> to vector<2x64xf32>
    %90 = arith.addf %88, %89 : vector<2x64xf32>
    %91 = vector.extract_strided_slice %90 {offsets = [0, 0], sizes = [2, 32], strides = [1, 1]} : vector<2x64xf32> to vector<2x32xf32>
    %92 = vector.extract_strided_slice %90 {offsets = [0, 32], sizes = [2, 32], strides = [1, 1]} : vector<2x64xf32> to vector<2x32xf32>
    %93 = arith.addf %91, %92 : vector<2x32xf32>
    %94 = vector.extract_strided_slice %93 {offsets = [0, 0], sizes = [2, 16], strides = [1, 1]} : vector<2x32xf32> to vector<2x16xf32>
    %95 = vector.extract_strided_slice %93 {offsets = [0, 16], sizes = [2, 16], strides = [1, 1]} : vector<2x32xf32> to vector<2x16xf32>
    %96 = arith.addf %94, %95 : vector<2x16xf32>
    %cst_15 = arith.constant 6.250000e-02 : f32
    %97 = vector.broadcast %cst_15 : f32 to vector<2x16xf32>
    %98 = arith.mulf %96, %97 : vector<2x16xf32>
    %cst_16 = arith.constant 9.99999974E-6 : f32
    %99 = vector.broadcast %cst_16 : f32 to vector<2x16xf32>
    %100 = arith.addf %98, %99 : vector<2x16xf32>
    %101 = math.rsqrt %100 : vector<2x16xf32>
    %102 = tpu.concatenate %101, %101, %101, %101, %101, %101, %101, %101, %101, %101, %101, %101, %101, %101, %101, %101 in 1 : vector<2x16xf32>, vector<2x16xf32>, vector<2x16xf32>, vector<2x16xf32>, vector<2x16xf32>, vector<2x16xf32>, vector<2x16xf32>, vector<2x16xf32>, vector<2x16xf32>, vector<2x16xf32>, vector<2x16xf32>, vector<2x16xf32>, vector<2x16xf32>, vector<2x16xf32>, vector<2x16xf32>, vector<2x16xf32> -> vector<2x256xf32>
    %103 = arith.mulf %83, %102 : vector<2x256xf32>
    %c0_17 = arith.constant 0 : index
    %c0_18 = arith.constant 0 : index
    %104 = vector.load %arg5[%c0_17, %c0_18] : memref<1x256xf32, #tpu.memory_space<vmem>>, vector<1x256xf32>
    %105 = vector.broadcast %104 : vector<1x256xf32> to vector<2x256xf32>
    %106 = arith.mulf %103, %105 : vector<2x256xf32>
    %c0_19 = arith.constant 0 : index
    %c0_20 = arith.constant 0 : index
    %107 = vector.load %arg6[%c0_19, %c0_20] : memref<1x256xf32, #tpu.memory_space<vmem>>, vector<1x256xf32>
    %108 = vector.broadcast %107 : vector<1x256xf32> to vector<2x256xf32>
    %109 = arith.addf %106, %108 : vector<2x256xf32>
    %c0_21 = arith.constant 0 : index
    %c0_22 = arith.constant 0 : index
    %110 = vector.load %arg7[%c0_21, %c0_22] : memref<2x256xf32, #tpu.memory_space<vmem>>, vector<2x256xf32>
    tpu.vector_store %arg7[%c0_21, %c0_22], %109 {strides = array<i32>} : memref<2x256xf32, #tpu.memory_space<vmem>>, vector<2x256xf32>,
    return
  }
  func.func @transform_0(%arg0: i32) -> (i32, i32, i32) {
    %c0_i32 = arith.constant 0 : i32
    %c0_i32_0 = arith.constant 0 : i32
    %c0_i32_1 = arith.constant 0 : i32
    return %arg0, %c0_i32, %c0_i32_0 : i32, i32, i32
  }
  func.func @transform_1(%arg0: i32) -> (i32, i32) {
    %c0_i32 = arith.constant 0 : i32
    %c0_i32_0 = arith.constant 0 : i32
    %c0_i32_1 = arith.constant 0 : i32
    return %c0_i32, %c0_i32_0 : i32, i32
  }
  func.func @transform_2(%arg0: i32) -> (i32, i32) {
    %c0_i32 = arith.constant 0 : i32
    %c0_i32_0 = arith.constant 0 : i32
    %c0_i32_1 = arith.constant 0 : i32
    return %c0_i32, %c0_i32_0 : i32, i32
  }
  func.func @transform_3(%arg0: i32) -> (i32, i32) {
    %c0_i32 = arith.constant 0 : i32
    %c0_i32_0 = arith.constant 0 : i32
    %c0_i32_1 = arith.constant 0 : i32
    return %c0_i32, %c0_i32_0 : i32, i32
  }
  func.func @transform_4(%arg0: i32) -> (i32, i32) {
    %c0_i32 = arith.constant 0 : i32
    %c0_i32_0 = arith.constant 0 : i32
    %c0_i32_1 = arith.constant 0 : i32
    return %c0_i32, %c0_i32_0 : i32, i32
  }
  func.func @transform_5(%arg0: i32) -> (i32, i32) {
    %c0_i32 = arith.constant 0 : i32
    %c0_i32_0 = arith.constant 0 : i32
    %c0_i32_1 = arith.constant 0 : i32
    return %c0_i32, %c0_i32_0 : i32, i32
  }
  func.func @transform_6(%arg0: i32) -> (i32, i32) {
    %c0_i32 = arith.constant 0 : i32
    %c0_i32_0 = arith.constant 0 : i32
    return %arg0, %c0_i32 : i32, i32
  }
  func.func @transform_7(%arg0: i32) -> (i32, i32, i32) {
    %c0_i32 = arith.constant 0 : i32
    %c0_i32_0 = arith.constant 0 : i32
    %c0_i32_1 = arith.constant 0 : i32
    return %arg0, %c0_i32, %c0_i32_0 : i32, i32, i32
  }
}

</mosaic_0001>

<llo_original>
// kernel: tpu_custom_call.1
$region0: #{tpu_custom_call.1}
  #allocation0 [shape = 'u32[]', space=smem, size = 0x4, offset = 0x4, fixed_abs, tag = 'smem constant byte address 0x4 - core index']
  #allocation1 [shape = 'u32[144,128]{1,0:T(1,128)}', space=vmem, size = 0x12000, scoped, tag = 'internal scratch']
  %s0 = inlined_call_operand.hbm [shape: f32[2,8,16], index: 0, kind: input, shape index: {}]
  %s1 = inlined_call_operand.hbm [shape: f32[128,256], index: 1, kind: input, shape index: {}]
  %s2 = inlined_call_operand.vmem [shape: f32[1,256], index: 2, kind: input, shape index: {}]
  %s3 = inlined_call_operand.vmem [shape: f32[8,128], index: 3, kind: input, shape index: {}]
  %s4 = inlined_call_operand.vmem [shape: f32[1,256], index: 4, kind: input, shape index: {}]
  %s5 = inlined_call_operand.vmem [shape: f32[1,256], index: 5, kind: input, shape index: {}]
  %s6 = inlined_call_operand.hbm [shape: f32[2,256], index: 6, kind: output, shape index: {0}]
  %s7 = inlined_call_operand.hbm [shape: f32[2,8,16], index: 7, kind: output, shape index: {1}]
  %8 = xla_tuple %s6, %s7
  %s9 = sld [smem:[#allocation0]]
  $region50: #{tpu_custom_call.1} parent=0
    _
  %s11 = ssub.s32 1, %s9
  %s12 = scalar_select 0, %s11, %s9
  $region1: #{tpu_custom_call.1} parent=0
    #allocation2 [shape = 'u8[8192]{0}', space=vmem, size = 0x2000, scoped, tag = 'input window, operand 0, single buffered']
    #allocation3 [shape = 's32[1]{0}', space=sflag, size = 0x4, scoped, tag = 'scoped memory for tpu_custom_call.1']
    #allocation4 [shape = 's32[1]{0}', space=sflag, size = 0x4, scoped, tag = 'scoped memory for tpu_custom_call.1']
    #allocation5 [shape = 'u8[131072]{0}', space=vmem, size = 0x20000, scoped, tag = 'input window, operand 1, single buffered']
    #allocation6 [shape = 's32[1]{0}', space=sflag, size = 0x4, scoped, tag = 'scoped memory for tpu_custom_call.1']
    #allocation7 [shape = 'u8[2048]{0}', space=vmem, size = 0x800, scoped, tag = 'output window, operand 0, single buffered']
    #allocation8 [shape = 'u8[8192]{0}', space=vmem, size = 0x2000, scoped, tag = 'output window, operand 1, single buffered']
    #allocation9 [shape = 's32[1]{0}', space=sflag, size = 0x4, scoped, tag = 'scoped memory for tpu_custom_call.1']
    %13 = vsyncpa [#allocation3], 0
    %14 = vsyncpa [#allocation6], 0
    %15 = vsyncpa [#allocation4], 0
    %16 = vsyncpa [#allocation9], 0
    // Predicated region
    $region2: #{tpu_custom_call.1} parent=1 // pred_check
      _
    $region3: #{tpu_custom_call.1} parent=1 // pred_check_branch
      %18 = sbr.rel (0) target = $region5
    $region4: #{tpu_custom_call.1} parent=1 // pred_region
      %s20 = ssub.s32 256, 256
      %21 = vsyncadd [#allocation3], %s20
      %s22 = sshll.u32 [#allocation2], 4
      %s23 = int_to_ptr.vmem [resolvable:$true] %s22
      %28 = dma.hbm_to_vmem [thread:$0]  %s0, 256, %s23, [#allocation3], 128, 128, 8
    $region5: #{tpu_custom_call.1} parent=1 // pred_fallthru
      _
    // Predicated region
    $region6: #{tpu_custom_call.1} parent=1 // pred_check
      _
    $region7: #{tpu_custom_call.1} parent=1 // pred_check_branch
      %30 = sbr.rel (0) target = $region9
    $region8: #{tpu_custom_call.1} parent=1 // pred_region
      %s32 = ssub.s32 4096, 4096
      %33 = vsyncadd [#allocation6], %s32
      %s34 = sshll.u32 [#allocation5], 4
      %s35 = int_to_ptr.vmem [resolvable:$true] %s34
      %40 = dma.hbm_to_vmem [thread:$0]  %s1, 4096, %s35, [#allocation6], 256, 256, 16
    $region9: #{tpu_custom_call.1} parent=1 // pred_fallthru
      _
    // Predicated region
    $region10: #{tpu_custom_call.1} parent=1 // pred_check
      _
    $region11: #{tpu_custom_call.1} parent=1 // pred_check_branch
      %42 = sbr.rel (0) target = $region13
    $region12: #{tpu_custom_call.1} parent=1 // pred_region
      _
    $region13: #{tpu_custom_call.1} parent=1 // pred_fallthru
      _
    // Predicated region
    $region14: #{tpu_custom_call.1} parent=1 // pred_check
      _
    $region15: #{tpu_custom_call.1} parent=1 // pred_check_branch
      %44 = sbr.rel (0) target = $region17
    $region16: #{tpu_custom_call.1} parent=1 // pred_region
      _
    $region17: #{tpu_custom_call.1} parent=1 // pred_fallthru
      _
    // Predicated region
    $region18: #{tpu_custom_call.1} parent=1 // pred_check
      _
    $region19: #{tpu_custom_call.1} parent=1 // pred_check_branch
      %46 = sbr.rel (0) target = $region21
    $region20: #{tpu_custom_call.1} parent=1 // pred_region
      _
    $region21: #{tpu_custom_call.1} parent=1 // pred_fallthru
      _
    // Predicated region
    $region22: #{tpu_custom_call.1} parent=1 // pred_check
      _
    $region23: #{tpu_custom_call.1} parent=1 // pred_check_branch
      %48 = sbr.rel (0) target = $region25
    $region24: #{tpu_custom_call.1} parent=1 // pred_region
      _
    $region25: #{tpu_custom_call.1} parent=1 // pred_fallthru
      _
    // Predicated region
    $region26: #{tpu_custom_call.1} parent=1 // pred_check
      _
    $region27: #{tpu_custom_call.1} parent=1 // pred_check_branch
      %50 = sbr.rel (0) target = $region29
    $region28: #{tpu_custom_call.1} parent=1 // pred_region
      %51 = dma.done [#allocation3], 256
    $region29: #{tpu_custom_call.1} parent=1 // pred_fallthru
      _
    // Predicated region
    $region30: #{tpu_custom_call.1} parent=1 // pred_check
      _
    $region31: #{tpu_custom_call.1} parent=1 // pred_check_branch
      %53 = sbr.rel (0) target = $region33
    $region32: #{tpu_custom_call.1} parent=1 // pred_region
      %54 = dma.done [#allocation6], 4096
    $region33: #{tpu_custom_call.1} parent=1 // pred_fallthru
      _
    %v55 = vld [vmem:[#allocation2] sm:$0xff]
    %v56 = vld [vmem:[#allocation2 + $0x8] sm:$0xff]
    %59 = vrot.lane.b32.xlu0 %v55, 16
    %v60 = vpop.permute.xlu0 %59
    %61 = vrot.lane.b32.xlu0 %v56, 16
    %v62 = vpop.permute.xlu0 %61
    %65 = vrot.lane.b32.xlu0 %v55, 32
    %v66 = vpop.permute.xlu0 %65
    %67 = vrot.lane.b32.xlu0 %v56, 32
    %v68 = vpop.permute.xlu0 %67
    %71 = vrot.lane.b32.xlu0 %v55, 48
    %v72 = vpop.permute.xlu0 %71
    %73 = vrot.lane.b32.xlu0 %v56, 48
    %v74 = vpop.permute.xlu0 %73
    %77 = vrot.lane.b32.xlu0 %v55, 64
    %v78 = vpop.permute.xlu0 %77
    %79 = vrot.lane.b32.xlu0 %v56, 64
    %v80 = vpop.permute.xlu0 %79
    %83 = vrot.lane.b32.xlu0 %v55, 80
    %v84 = vpop.permute.xlu0 %83
    %85 = vrot.lane.b32.xlu0 %v56, 80
    %v86 = vpop.permute.xlu0 %85
    %89 = vrot.lane.b32.xlu0 %v55, 96
    %v90 = vpop.permute.xlu0 %89
    %91 = vrot.lane.b32.xlu0 %v56, 96
    %v92 = vpop.permute.xlu0 %91
    %95 = vrot.lane.b32.xlu0 %v55, 112
    %v96 = vpop.permute.xlu0 %95
    %97 = vrot.lane.b32.xlu0 %v56, 112
    %v98 = vpop.permute.xlu0 %97
    %vm101 = vcmask 130048
    %v102 = vsel %vm101, %v55, %v60
    %v103 = vsel %vm101, %v56, %v62
    %vm104 = vcmask 261120
    %v105 = vsel %vm104, %v102, %v66
    %v106 = vsel %vm104, %v103, %v68
    %vm107 = vcmask 392192
    %v108 = vsel %vm107, %v105, %v72
    %v109 = vsel %vm107, %v106, %v74
    %vm110 = vcmask 523264
    %v111 = vsel %vm110, %v108, %v78
    %v112 = vsel %vm110, %v109, %v80
    %vm113 = vcmask 654336
    %v114 = vsel %vm113, %v111, %v84
    %v115 = vsel %vm113, %v112, %v86
    %vm116 = vcmask 785408
    %v117 = vsel %vm116, %v114, %v90
    %v118 = vsel %vm116, %v115, %v92
    %vm119 = vcmask 916480
    %v120 = vsel %vm119, %v117, %v96
    %v121 = vsel %vm119, %v118, %v98
    %v122 = vld [vmem:[%s3] sm:$0xff]
    %v123 = vmul.f32 %v120, %v122
    %v124 = vmul.f32 %v121, %v122
    %v125 = vld [vmem:[#allocation5] sm:$0xff]
    %v126 = vld [vmem:[#allocation5 + $0x8] sm:$0xff]
    %v127 = vld [vmem:[#allocation5 + $0x10] sm:$0xff]
    %v128 = vld [vmem:[#allocation5 + $0x18] sm:$0xff]
    %v129 = vld [vmem:[#allocation5 + $0x20] sm:$0xff]
    %v130 = vld [vmem:[#allocation5 + $0x28] sm:$0xff]
    %v131 = vld [vmem:[#allocation5 + $0x30] sm:$0xff]
    %v132 = vld [vmem:[#allocation5 + $0x38] sm:$0xff]
    %v133 = vld [vmem:[#allocation5 + $0x40] sm:$0xff]
    %v134 = vld [vmem:[#allocation5 + $0x48] sm:$0xff]
    %v135 = vld [vmem:[#allocation5 + $0x50] sm:$0xff]
    %v136 = vld [vmem:[#allocation5 + $0x58] sm:$0xff]
    %v137 = vld [vmem:[#allocation5 + $0x60] sm:$0xff]
    %v138 = vld [vmem:[#allocation5 + $0x68] sm:$0xff]
    %v139 = vld [vmem:[#allocation5 + $0x70] sm:$0xff]
    %v140 = vld [vmem:[#allocation5 + $0x78] sm:$0xff]
    %v141 = vld [vmem:[#allocation5 + $0x80] sm:$0xff]
    %v142 = vld [vmem:[#allocation5 + $0x88] sm:$0xff]
    %v143 = vld [vmem:[#allocation5 + $0x90] sm:$0xff]
    %v144 = vld [vmem:[#allocation5 + $0x98] sm:$0xff]
    %v145 = vld [vmem:[#allocation5 + $0xa0] sm:$0xff]
    %v146 = vld [vmem:[#allocation5 + $0xa8] sm:$0xff]
    %v147 = vld [vmem:[#allocation5 + $0xb0] sm:$0xff]
    %v148 = vld [vmem:[#allocation5 + $0xb8] sm:$0xff]
    %v149 = vld [vmem:[#allocation5 + $0xc0] sm:$0xff]
    %v150 = vld [vmem:[#allocation5 + $0xc8] sm:$0xff]
    %v151 = vld [vmem:[#allocation5 + $0xd0] sm:$0xff]
    %v152 = vld [vmem:[#allocation5 + $0xd8] sm:$0xff]
    %v153 = vld [vmem:[#allocation5 + $0xe0] sm:$0xff]
    %v154 = vld [vmem:[#allocation5 + $0xe8] sm:$0xff]
    %v155 = vld [vmem:[#allocation5 + $0xf0] sm:$0xff]
    %v156 = vld [vmem:[#allocation5 + $0xf8] sm:$0xff]
    %157 = vmatprep.subr.mxu0 %v126
    %158 = vmatpush1.msra.mxu0 %v125
    %159 = vmatprep.subr.mxu0 %v128
    %160 = vmatpush1.msra.mxu0 %v127
    %161 = vmatprep.subr.mxu0 %v130
    %162 = vmatpush1.msra.mxu0 %v129
    %163 = vmatprep.subr.mxu0 %v132
    %164 = vmatpush1.msra.mxu0 %v131
    %165 = vmatprep.subr.mxu0 %v134
    %166 = vmatpush1.msra.mxu0 %v133
    %167 = vmatprep.subr.mxu0 %v136
    %168 = vmatpush1.msra.mxu0 %v135
    %169 = vmatprep.subr.mxu0 %v138
    %170 = vmatpush1.msra.mxu0 %v137
    %171 = vmatprep.subr.mxu0 %v140
    %172 = vmatpush1.msra.mxu0 %v139
    %173 = vmatprep.subr.mxu0 %v142
    %174 = vmatpush1.msra.mxu0 %v141
    %175 = vmatprep.subr.mxu0 %v144
    %176 = vmatpush1.msra.mxu0 %v143
    %177 = vmatprep.subr.mxu0 %v146
    %178 = vmatpush1.msra.mxu0 %v145
    %179 = vmatprep.subr.mxu0 %v148
    %180 = vmatpush1.msra.mxu0 %v147
    %181 = vmatprep.subr.mxu0 %v150
    %182 = vmatpush1.msra.mxu0 %v149
    %183 = vmatprep.subr.mxu0 %v152
    %184 = vmatpush1.msra.mxu0 %v151
    %185 = vmatprep.subr.mxu0 %v154
    %186 = vmatpush1.msra.mxu0 %v153
    %187 = vmatprep.subr.mxu0 %v156
    %188 = vmatpush1.msra.mxu0 %v155
    %189 = vmatprep.subr.mxu0 0.0
    %190 = vmatpush1.msra.mxu0 0.0
    %191 = vmatprep.subr.mxu0 0.0
    %192 = vmatpush1.msra.mxu0 0.0
    %193 = vmatprep.subr.mxu0 0.0
    %194 = vmatpush1.msra.mxu0 0.0
    %195 = vmatprep.subr.mxu0 0.0
    %196 = vmatpush1.msra.mxu0 0.0
    %197 = vmatprep.subr.mxu0 0.0
    %198 = vmatpush1.msra.mxu0 0.0
    %199 = vmatprep.subr.mxu0 0.0
    %200 = vmatpush1.msra.mxu0 0.0
    %201 = vmatprep.subr.mxu0 0.0
    %202 = vmatpush1.msra.mxu0 0.0
    %203 = vmatprep.subr.mxu0 0.0
    %204 = vmatpush1.msra.mxu0 0.0
    %205 = vmatprep.subr.mxu0 0.0
    %206 = vmatpush1.msra.mxu0 0.0
    %207 = vmatprep.subr.mxu0 0.0
    %208 = vmatpush1.msra.mxu0 0.0
    %209 = vmatprep.subr.mxu0 0.0
    %210 = vmatpush1.msra.mxu0 0.0
    %211 = vmatprep.subr.mxu0 0.0
    %212 = vmatpush1.msra.mxu0 0.0
    %213 = vmatprep.subr.mxu0 0.0
    %214 = vmatpush1.msra.mxu0 0.0
    %215 = vmatprep.subr.mxu0 0.0
    %216 = vmatpush1.msra.mxu0 0.0
    %217 = vmatprep.subr.mxu0 0.0
    %218 = vmatpush1.msra.mxu0 0.0
    %219 = vmatprep.subr.mxu0 0.0
    %220 = vmatpush1.msra.mxu0 0.0
    %221 = vmatprep.mubr.f32.mxu0 0.0
    %222 = vmatmul.mubr.f32.gmra.mrb[0].mxu0 %v123
    %v223 = vpop.f32.mrb[0].mxu0
    %v224 = vadd.f32 0.0, %v223
    %v225 = vpop.f32.mrb[0].mxu0
    %v226 = vadd.f32 0.0, %v225
    %227 = vmatprep.mubr.f32.mxu0 0.0
    %228 = vmatmul.mubr.f32.gmra.mrb[0].mxu0 %v124
    %v229 = vpop.f32.mrb[0].mxu0
    %v230 = vadd.f32 0.0, %v229
    %v231 = vpop.f32.mrb[0].mxu0
    %v232 = vadd.f32 0.0, %v231
    %233 = vdwg.mxu0
    %v234 = vmax.f32 %v224, %v226
    %v235 = vmax.f32 %v230, %v232
    %238 = vrot.lane.b32.xlu0 %v234, 64
    %v239 = vpop.permute.xlu0 %238
    %240 = vrot.lane.b32.xlu0 %v235, 64
    %v241 = vpop.permute.xlu0 %240
    %v244 = vmax.f32 %v234, %v239
    %v245 = vmax.f32 %v235, %v241
    %248 = vrot.lane.b32.xlu0 %v244, 96
    %v249 = vpop.permute.xlu0 %248
    %250 = vrot.lane.b32.xlu0 %v245, 96
    %v251 = vpop.permute.xlu0 %250
    %v254 = vmax.f32 %v244, %v249
    %v255 = vmax.f32 %v245, %v251
    %258 = vrot.lane.b32.xlu0 %v254, 112
    %v259 = vpop.permute.xlu0 %258
    %260 = vrot.lane.b32.xlu0 %v255, 112
    %v261 = vpop.permute.xlu0 %260
    %v264 = vmax.f32 %v254, %v259
    %v265 = vmax.f32 %v255, %v261
    %268 = vrot.lane.b32.xlu0 %v264, 16
    %v269 = vpop.permute.xlu0 %268
    %270 = vrot.lane.b32.xlu0 %v265, 16
    %v271 = vpop.permute.xlu0 %270
    %274 = vrot.lane.b32.xlu0 %v264, 32
    %v275 = vpop.permute.xlu0 %274
    %276 = vrot.lane.b32.xlu0 %v265, 32
    %v277 = vpop.permute.xlu0 %276
    %280 = vrot.lane.b32.xlu0 %v264, 48
    %v281 = vpop.permute.xlu0 %280
    %282 = vrot.lane.b32.xlu0 %v265, 48
    %v283 = vpop.permute.xlu0 %282
    %286 = vrot.lane.b32.xlu0 %v264, 64
    %v287 = vpop.permute.xlu0 %286
    %288 = vrot.lane.b32.xlu0 %v265, 64
    %v289 = vpop.permute.xlu0 %288
    %292 = vrot.lane.b32.xlu0 %v264, 80
    %v293 = vpop.permute.xlu0 %292
    %294 = vrot.lane.b32.xlu0 %v265, 80
    %v295 = vpop.permute.xlu0 %294
    %298 = vrot.lane.b32.xlu0 %v264, 96
    %v299 = vpop.permute.xlu0 %298
    %300 = vrot.lane.b32.xlu0 %v265, 96
    %v301 = vpop.permute.xlu0 %300
    %304 = vrot.lane.b32.xlu0 %v264, 112
    %v305 = vpop.permute.xlu0 %304
    %306 = vrot.lane.b32.xlu0 %v265, 112
    %v307 = vpop.permute.xlu0 %306
    %v310 = vsel %vm101, %v264, %v269
    %v311 = vsel %vm101, %v265, %v271
    %v312 = vsel %vm104, %v310, %v275
    %v313 = vsel %vm104, %v311, %v277
    %v314 = vsel %vm107, %v312, %v281
    %v315 = vsel %vm107, %v313, %v283
    %v316 = vsel %vm110, %v314, %v287
    %v317 = vsel %vm110, %v315, %v289
    %v318 = vsel %vm113, %v316, %v293
    %v319 = vsel %vm113, %v317, %v295
    %v320 = vsel %vm116, %v318, %v299
    %v321 = vsel %vm116, %v319, %v301
    %v322 = vsel %vm119, %v320, %v305
    %v323 = vsel %vm119, %v321, %v307
    %v324 = vsub.f32 %v224, %v322
    %v325 = vsub.f32 %v226, %v322
    %v326 = vsub.f32 %v230, %v323
    %v327 = vsub.f32 %v232, %v323
    %v328 = vmul.f32 %v324, 1.442695
    %v329 = vpow.pop %v328
    %v330 = vmul.f32 %v325, 1.442695
    %v331 = vpow.pop %v330
    %v332 = vmul.f32 %v326, 1.442695
    %v333 = vpow.pop %v332
    %v334 = vmul.f32 %v327, 1.442695
    %v335 = vpow.pop %v334
    %v336 = vadd.f32 %v329, %v331
    %v337 = vadd.f32 %v333, %v335
    %340 = vrot.lane.b32.xlu0 %v336, 64
    %v341 = vpop.permute.xlu0 %340
    %342 = vrot.lane.b32.xlu0 %v337, 64
    %v343 = vpop.permute.xlu0 %342
    %v346 = vadd.f32 %v336, %v341
    %v347 = vadd.f32 %v337, %v343
    %350 = vrot.lane.b32.xlu0 %v346, 96
    %v351 = vpop.permute.xlu0 %350
    %352 = vrot.lane.b32.xlu0 %v347, 96
    %v353 = vpop.permute.xlu0 %352
    %v356 = vadd.f32 %v346, %v351
    %v357 = vadd.f32 %v347, %v353
    %360 = vrot.lane.b32.xlu0 %v356, 112
    %v361 = vpop.permute.xlu0 %360
    %362 = vrot.lane.b32.xlu0 %v357, 112
    %v363 = vpop.permute.xlu0 %362
    %v366 = vadd.f32 %v356, %v361
    %v367 = vadd.f32 %v357, %v363
    %v368 = vld [vmem:[%s2] sm:$0x3]
    %v370 = vlaneseq
    %v371 = vshrl.u32 %v370, 7
    %v372 = vsub.s32 0, %v371
    %v373 = vrot.slane %v368, %v372
    %v374 = vlaneseq
    %v375 = vshrl.u32 %v374, 7
    %v376 = vsub.s32 1, %v375
    %v377 = vrot.slane %v368, %v376
    %v380 = vmul.f32 %v329, %v373
    %v381 = vmul.f32 %v331, %v377
    %v382 = vmul.f32 %v333, %v373
    %v383 = vmul.f32 %v335, %v377
    %v384 = vadd.f32 %v380, %v381
    %v385 = vadd.f32 %v382, %v383
    %388 = vrot.lane.b32.xlu0 %v384, 64
    %v389 = vpop.permute.xlu0 %388
    %390 = vrot.lane.b32.xlu0 %v385, 64
    %v391 = vpop.permute.xlu0 %390
    %v394 = vadd.f32 %v384, %v389
    %v395 = vadd.f32 %v385, %v391
    %398 = vrot.lane.b32.xlu0 %v394, 96
    %v399 = vpop.permute.xlu0 %398
    %400 = vrot.lane.b32.xlu0 %v395, 96
    %v401 = vpop.permute.xlu0 %400
    %v404 = vadd.f32 %v394, %v399
    %v405 = vadd.f32 %v395, %v401
    %408 = vrot.lane.b32.xlu0 %v404, 112
    %v409 = vpop.permute.xlu0 %408
    %410 = vrot.lane.b32.xlu0 %v405, 112
    %v411 = vpop.permute.xlu0 %410
    %v414 = vadd.f32 %v404, %v409
    %v415 = vadd.f32 %v405, %v411
    %v416 = vrcp.pop %v366
    %v417 = vmul.f32 %v414, %v416
    %v418 = vrcp.pop %v367
    %v419 = vmul.f32 %v415, %v418
    %420 = vst.msk [vmem:[#allocation8] sm:$0xff] %vm101, %v417
    %421 = vst.msk [vmem:[#allocation8 + $0x8] sm:$0xff] %vm101, %v419
    %v422 = vsel %vm101, %v417, -inf
    %423 = vmax.xlane.f32.xlu0 %v422
    %v424 = vpop.xlane.xlu0 %423
    %v425 = vsel %vm101, %v419, -inf
    %426 = vmax.xlane.f32.xlu0 %v425
    %v427 = vpop.xlane.xlu0 %426
    %v428 = vsub.f32 %v417, %v424
    %v429 = vsub.f32 %v419, %v427
    %v430 = vmul.f32 %v428, 1.442695
    %v431 = vpow.pop %v430
    %v432 = vmul.f32 %v429, 1.442695
    %v433 = vpow.pop %v432
    %v434 = vsel %vm101, %v431, 0.0
    %435 = vadd.xlane.f32.xlu0 %v434
    %v436 = vpop.xlane.xlu0 %435
    %v437 = vsel %vm101, %v433, 0.0
    %438 = vadd.xlane.f32.xlu0 %v437
    %v439 = vpop.xlane.xlu0 %438
    %v440 = vrcp.pop %v436
    %v441 = vmul.f32 %v431, %v440
    %v442 = vrcp.pop %v439
    %v443 = vmul.f32 %v433, %v442
    %v444 = vmul.f32 %v441, %v416
    %v445 = vmul.f32 %v443, %v418
    %448 = vrot.lane.b32.xlu0 %v444, 16
    %v449 = vpop.permute.xlu0 %448
    %450 = vrot.lane.b32.xlu0 %v445, 16
    %v451 = vpop.permute.xlu0 %450
    %454 = vrot.lane.b32.xlu0 %v444, 32
    %v455 = vpop.permute.xlu0 %454
    %456 = vrot.lane.b32.xlu0 %v445, 32
    %v457 = vpop.permute.xlu0 %456
    %460 = vrot.lane.b32.xlu0 %v444, 48
    %v461 = vpop.permute.xlu0 %460
    %462 = vrot.lane.b32.xlu0 %v445, 48
    %v463 = vpop.permute.xlu0 %462
    %466 = vrot.lane.b32.xlu0 %v444, 64
    %v467 = vpop.permute.xlu0 %466
    %468 = vrot.lane.b32.xlu0 %v445, 64
    %v469 = vpop.permute.xlu0 %468
    %472 = vrot.lane.b32.xlu0 %v444, 80
    %v473 = vpop.permute.xlu0 %472
    %474 = vrot.lane.b32.xlu0 %v445, 80
    %v475 = vpop.permute.xlu0 %474
    %478 = vrot.lane.b32.xlu0 %v444, 96
    %v479 = vpop.permute.xlu0 %478
    %480 = vrot.lane.b32.xlu0 %v445, 96
    %v481 = vpop.permute.xlu0 %480
    %484 = vrot.lane.b32.xlu0 %v444, 112
    %v485 = vpop.permute.xlu0 %484
    %486 = vrot.lane.b32.xlu0 %v445, 112
    %v487 = vpop.permute.xlu0 %486
    %v490 = vsel %vm101, %v444, %v449
    %v491 = vsel %vm101, %v445, %v451
    %v492 = vsel %vm104, %v490, %v455
    %v493 = vsel %vm104, %v491, %v457
    %v494 = vsel %vm107, %v492, %v461
    %v495 = vsel %vm107, %v493, %v463
    %v496 = vsel %vm110, %v494, %v467
    %v497 = vsel %vm110, %v495, %v469
    %v498 = vsel %vm113, %v496, %v473
    %v499 = vsel %vm113, %v497, %v475
    %v500 = vsel %vm116, %v498, %v479
    %v501 = vsel %vm116, %v499, %v481
    %v502 = vsel %vm119, %v500, %v485
    %v503 = vsel %vm119, %v501, %v487
    %v504 = vmul.f32 %v329, %v502
    %v505 = vmul.f32 %v331, %v502
    %v506 = vmul.f32 %v333, %v503
    %v507 = vmul.f32 %v335, %v503
    %v508 = vrot.slane %v504, 4
    %v509 = vadd.f32 %v504, %v508
    %v510 = vrot.slane %v509, 2
    %v511 = vadd.f32 %v509, %v510
    %v512 = vrot.slane %v511, 1
    %v513 = vadd.f32 %v511, %v512
    %v514 = vrot.slane %v505, 4
    %v515 = vadd.f32 %v505, %v514
    %v516 = vrot.slane %v515, 2
    %v517 = vadd.f32 %v515, %v516
    %v518 = vrot.slane %v517, 1
    %v519 = vadd.f32 %v517, %v518
    %v520 = vrot.slane %v506, 4
    %v521 = vadd.f32 %v506, %v520
    %v522 = vrot.slane %v521, 2
    %v523 = vadd.f32 %v521, %v522
    %v524 = vrot.slane %v523, 1
    %v525 = vadd.f32 %v523, %v524
    %v526 = vrot.slane %v507, 4
    %v527 = vadd.f32 %v507, %v526
    %v528 = vrot.slane %v527, 2
    %v529 = vadd.f32 %v527, %v528
    %v530 = vrot.slane %v529, 1
    %v531 = vadd.f32 %v529, %v530
    %v532 = vadd.f32 %v513, %v519
    %v533 = vadd.f32 %v525, %v531
    %536 = vrot.lane.b32.xlu0 %v532, 64
    %v537 = vpop.permute.xlu0 %536
    %538 = vrot.lane.b32.xlu0 %v533, 64
    %v539 = vpop.permute.xlu0 %538
    %v542 = vadd.f32 %v532, %v537
    %v543 = vadd.f32 %v533, %v539
    %546 = vrot.lane.b32.xlu0 %v542, 96
    %v547 = vpop.permute.xlu0 %546
    %548 = vrot.lane.b32.xlu0 %v543, 96
    %v549 = vpop.permute.xlu0 %548
    %v552 = vadd.f32 %v542, %v547
    %v553 = vadd.f32 %v543, %v549
    %556 = vrot.lane.b32.xlu0 %v552, 112
    %v557 = vpop.permute.xlu0 %556
    %558 = vrot.lane.b32.xlu0 %v553, 112
    %v559 = vpop.permute.xlu0 %558
    %v562 = vadd.f32 %v552, %v557
    %v563 = vadd.f32 %v553, %v559
    %v564 = vmul.f32 %v562, 0.0625
    %v565 = vmul.f32 %v563, 0.0625
    %v568 = vrot.slane %v565, 7
    %vm569 = vcmask 1041409
    %v570 = vsel %vm569, %v568, %v564
    %572 = vrot.lane.b32.xlu0 %v570, 16
    %v573 = vpop.permute.xlu0 %572
    %575 = vrot.lane.b32.xlu0 %v570, 32
    %v576 = vpop.permute.xlu0 %575
    %578 = vrot.lane.b32.xlu0 %v570, 48
    %v579 = vpop.permute.xlu0 %578
    %581 = vrot.lane.b32.xlu0 %v570, 64
    %v582 = vpop.permute.xlu0 %581
    %584 = vrot.lane.b32.xlu0 %v570, 80
    %v585 = vpop.permute.xlu0 %584
    %587 = vrot.lane.b32.xlu0 %v570, 96
    %v588 = vpop.permute.xlu0 %587
    %590 = vrot.lane.b32.xlu0 %v570, 112
    %v591 = vpop.permute.xlu0 %590
    %v593 = vsel %vm101, %v570, %v573
    %v594 = vsel %vm104, %v593, %v576
    %v595 = vsel %vm107, %v594, %v579
    %v596 = vsel %vm110, %v595, %v582
    %v597 = vsel %vm113, %v596, %v585
    %v598 = vsel %vm116, %v597, %v588
    %v599 = vsel %vm119, %v598, %v591
    %v601 = vrot.slane %v599, 1
    %v604 = vsub.f32 %v513, %v599
    %v605 = vsub.f32 %v519, %v599
    %v606 = vsub.f32 %v525, %v601
    %v607 = vsub.f32 %v531, %v601
    %v608 = vmul.f32 %v604, %v604
    %v609 = vmul.f32 %v605, %v605
    %v610 = vmul.f32 %v606, %v606
    %v611 = vmul.f32 %v607, %v607
    %v612 = vadd.f32 %v608, %v609
    %v613 = vadd.f32 %v610, %v611
    %616 = vrot.lane.b32.xlu0 %v612, 64
    %v617 = vpop.permute.xlu0 %616
    %618 = vrot.lane.b32.xlu0 %v613, 64
    %v619 = vpop.permute.xlu0 %618
    %v622 = vadd.f32 %v612, %v617
    %v623 = vadd.f32 %v613, %v619
    %626 = vrot.lane.b32.xlu0 %v622, 96
    %v627 = vpop.permute.xlu0 %626
    %628 = vrot.lane.b32.xlu0 %v623, 96
    %v629 = vpop.permute.xlu0 %628
    %v632 = vadd.f32 %v622, %v627
    %v633 = vadd.f32 %v623, %v629
    %636 = vrot.lane.b32.xlu0 %v632, 112
    %v637 = vpop.permute.xlu0 %636
    %638 = vrot.lane.b32.xlu0 %v633, 112
    %v639 = vpop.permute.xlu0 %638
    %v642 = vadd.f32 %v632, %v637
    %v643 = vadd.f32 %v633, %v639
    %v644 = vmul.f32 %v642, 0.0625
    %v645 = vmul.f32 %v643, 0.0625
    %v646 = vadd.f32 %v644, 1e-05
    %v647 = vadd.f32 %v645, 1e-05
    %v648 = vrsqrt.pop %v646
    %v649 = vrsqrt.pop %v647
    %v652 = vrot.slane %v649, 7
    %v653 = vsel %vm569, %v652, %v648
    %655 = vrot.lane.b32.xlu0 %v653, 16
    %v656 = vpop.permute.xlu0 %655
    %658 = vrot.lane.b32.xlu0 %v653, 32
    %v659 = vpop.permute.xlu0 %658
    %661 = vrot.lane.b32.xlu0 %v653, 48
    %v662 = vpop.permute.xlu0 %661
    %664 = vrot.lane.b32.xlu0 %v653, 64
    %v665 = vpop.permute.xlu0 %664
    %667 = vrot.lane.b32.xlu0 %v653, 80
    %v668 = vpop.permute.xlu0 %667
    %670 = vrot.lane.b32.xlu0 %v653, 96
    %v671 = vpop.permute.xlu0 %670
    %673 = vrot.lane.b32.xlu0 %v653, 112
    %v674 = vpop.permute.xlu0 %673
    %v676 = vsel %vm101, %v653, %v656
    %v677 = vsel %vm104, %v676, %v659
    %v678 = vsel %vm107, %v677, %v662
    %v679 = vsel %vm110, %v678, %v665
    %v680 = vsel %vm113, %v679, %v668
    %v681 = vsel %vm116, %v680, %v671
    %v682 = vsel %vm119, %v681, %v674
    %v684 = vrot.slane %v682, 1
    %v687 = vmul.f32 %v604, %v682
    %v688 = vmul.f32 %v605, %v682
    %v689 = vmul.f32 %v606, %v684
    %v690 = vmul.f32 %v607, %v684
    %v691 = vld [vmem:[%s4] sm:$0x3]
    %v693 = vlaneseq
    %v694 = vshrl.u32 %v693, 7
    %v695 = vsub.s32 0, %v694
    %v696 = vrot.slane %v691, %v695
    %v697 = vlaneseq
    %v698 = vshrl.u32 %v697, 7
    %v699 = vsub.s32 1, %v698
    %v700 = vrot.slane %v691, %v699
    %v703 = vmul.f32 %v687, %v696
    %v704 = vmul.f32 %v688, %v700
    %v705 = vmul.f32 %v689, %v696
    %v706 = vmul.f32 %v690, %v700
    %v707 = vld [vmem:[%s5] sm:$0x3]
    %v709 = vlaneseq
    %v710 = vshrl.u32 %v709, 7
    %v711 = vsub.s32 0, %v710
    %v712 = vrot.slane %v707, %v711
    %v713 = vlaneseq
    %v714 = vshrl.u32 %v713, 7
    %v715 = vsub.s32 1, %v714
    %v716 = vrot.slane %v707, %v715
    %v719 = vadd.f32 %v703, %v712
    %v720 = vadd.f32 %v704, %v716
    %v721 = vadd.f32 %v705, %v712
    %v722 = vadd.f32 %v706, %v716
    %v727 = vcombine.low %v719, %v720
    %v729 = vunpack.c.l.s4 1983009808
    %v730 = vunpack.c.0.s8 %v729
    %v731 = vlaneseq
    %v732 = vshrl.u32 %v731, 7
    %v733 = vsub.s32 %v730, %v732
    %v734 = vrot.slane %v727, %v733
    %v735 = vcombine.low %v721, %v722
    %v737 = vunpack.c.l.s4 1983009808
    %v738 = vunpack.c.0.s8 %v737
    %v739 = vlaneseq
    %v740 = vshrl.u32 %v739, 7
    %v741 = vsub.s32 %v738, %v740
    %v742 = vrot.slane %v735, %v741
    %vm743 = vcmask 1044484
    %v744 = vsel %vm743, %v734, %v734
    %vm745 = vcmask 1046534
    %v746 = vsel %vm745, %v734, %v744
    %v747 = vrot.slane %v742, 7
    %v748 = vsel %vm569, %v747, %v746
    %vm749 = vcmask 1043459
    %v750 = vsel %vm749, %v747, %v748
    %vm751 = vcmask 1045509
    %v752 = vsel %vm751, %v747, %v750
    %vm753 = vcmask 1047559
    %v754 = vsel %vm753, %v747, %v752
    %756 = vst [vmem:[#allocation7] sm:$0xf] %v754
    // Predicated region
    $region34: #{tpu_custom_call.1} parent=1 // pred_check
      _
    $region35: #{tpu_custom_call.1} parent=1 // pred_check_branch
      %758 = sbr.rel (0) target = $region37
    $region36: #{tpu_custom_call.1} parent=1 // pred_region
      %s760 = ssub.s32 64, 64
      %761 = vsyncadd [#allocation4], %s760
      %s763 = sshll.u32 [#allocation7], 4
      %s764 = int_to_ptr.vmem [resolvable:$true] %s763
      %766 = dma.vmem_to_hbm [thread:$0]  %s764, 64, %s6, [#allocation4]
    $region37: #{tpu_custom_call.1} parent=1 // pred_fallthru
      _
    // Predicated region
    $region38: #{tpu_custom_call.1} parent=1 // pred_check
      _
    $region39: #{tpu_custom_call.1} parent=1 // pred_check_branch
      %768 = sbr.rel (0) target = $region41
    $region40: #{tpu_custom_call.1} parent=1 // pred_region
      %s770 = ssub.s32 256, 256
      %771 = vsyncadd [#allocation9], %s770
      %s772 = sshll.u32 [#allocation8], 4
      %s773 = int_to_ptr.vmem [resolvable:$true] %s772
      %778 = dma.vmem_to_hbm [thread:$0]  %s773, 256, %s7, [#allocation9], 128, 128, 8
    $region41: #{tpu_custom_call.1} parent=1 // pred_fallthru
      _
    // Predicated region
    $region42: #{tpu_custom_call.1} parent=1 // pred_check
      _
    $region43: #{tpu_custom_call.1} parent=1 // pred_check_branch
      %780 = sbr.rel (0) target = $region45
    $region44: #{tpu_custom_call.1} parent=1 // pred_region
      %781 = dma.done [#allocation4], 64
    $region45: #{tpu_custom_call.1} parent=1 // pred_fallthru
      _
    // Predicated region
    $region46: #{tpu_custom_call.1} parent=1 // pred_check
      _
    $region47: #{tpu_custom_call.1} parent=1 // pred_check_branch
      %783 = sbr.rel (0) target = $region49
    $region48: #{tpu_custom_call.1} parent=1 // pred_region
      %784 = dma.done [#allocation9], 256
    $region49: #{tpu_custom_call.1} parent=1 // pred_fallthru
      _
    %785 = vsyncpa [#allocation3], 1
    %786 = vsyncpa [#allocation6], 1
    %787 = vsyncpa [#allocation4], 1
    %788 = vsyncpa [#allocation9], 1

</llo_original>
